<compile_context>
chip_gen: v7x
topology: tpu7x:2x2x1
jax: 0.10.0
libtpu: 0.0.40
codegen_flags: <defaults>
</compile_context>

<pallas_src>
import jax
import jax.numpy as jnp
from jax.experimental import pallas as pl
from jax.experimental.pallas import tpu as pltpu


def _round_up(n, m):
    return ((n + m - 1) // m) * m


def _pad2d(a, rows, cols):
    return jnp.pad(a, ((0, rows - a.shape[0]), (0, cols - a.shape[1])))


# --------------------------------------------------------------------------
# Kernel: all four matmuls + relus fused, weights resident, batch tiled.
# --------------------------------------------------------------------------
def _p2s_kernel(x_ref, w1_ref, b1_ref, w2_ref, b2_ref, wo_ref, bo_ref, o_ref):
    cdt = w1_ref.dtype  # MXU operand dtype (bf16 default); accumulate in f32

    # In-kernel cast (no-op if x already matches) avoids a wrapper-side HBM
    # cast pass over x.
    x = x_ref[...].astype(cdt)

    # fc1 + relu
    y = jnp.dot(x, w1_ref[...], preferred_element_type=jnp.float32) + b1_ref[...]
    y = jnp.maximum(y, 0.0)

    # fc2 + relu (applied twice, as in the reference forward)
    y = jnp.dot(y.astype(cdt), w2_ref[...],
                preferred_element_type=jnp.float32) + b2_ref[...]
    y = jnp.maximum(y, 0.0)
    y = jnp.dot(y.astype(cdt), w2_ref[...],
                preferred_element_type=jnp.float32) + b2_ref[...]
    y = jnp.maximum(y, 0.0)

    # out layer (no activation)
    out = jnp.dot(y.astype(cdt), wo_ref[...],
                  preferred_element_type=jnp.float32) + bo_ref[...]
    o_ref[...] = out.astype(o_ref.dtype)


# --------------------------------------------------------------------------
# One-time parameter prep (hoisted out of the per-call hot path).
# --------------------------------------------------------------------------
def prepare_params(raw, *, matmul_dtype=jnp.bfloat16):
    """Pad/cast weights once.

    Only the hidden (=100) dims are zero-padded to 128 so every matmul K/N
    and every intermediate is lane-dense.  Padding is correctness-neutral:
    padded bias lanes are 0, relu(0) = 0, padded weight rows/cols are 0.
    x's feature dim (36) and the output dim (100) are NOT padded.
    """
    input_dim, hidden = raw["w1"].shape
    output_dim = raw["wo"].shape[1]
    h_p = _round_up(hidden, 128)

    return {
        "w1": _pad2d(raw["w1"], input_dim, h_p).astype(matmul_dtype),
        "b1": _pad2d(raw["b1"], 1, h_p).astype(jnp.float32),
        "w2": _pad2d(raw["w2"], h_p, h_p).astype(matmul_dtype),
        "b2": _pad2d(raw["b2"], 1, h_p).astype(jnp.float32),
        "wo": _pad2d(raw["wo"], h_p, output_dim).astype(matmul_dtype),
        "bo": raw["bo"].astype(jnp.float32),
    }


# --------------------------------------------------------------------------
# Forward wrapper.
# --------------------------------------------------------------------------
def p2s_forward(x, params, *, batch_tile=2048):
    """x: (B, input_dim).  params: output of prepare_params()."""
    B, input_dim = x.shape
    h_p = params["w2"].shape[0]          # padded hidden (128)
    output_dim = params["wo"].shape[1]
    assert params["w1"].shape[0] == input_dim

    # Batch tile: multiple of 8, big enough to amortize per-grid-step overhead,
    # but capped so the parallel batch axis has >= 2 steps (both v7x TCs).
    tb = max(8, _round_up(batch_tile, 8))
    tb = min(tb, max(8, _round_up(pl.cdiv(B, 2), 8)))
    grid = (pl.cdiv(B, tb),)             # partial tail block handled by Pallas

    x_bytes = jnp.dtype(x.dtype).itemsize
    w_bytes = jnp.dtype(params["w1"].dtype).itemsize

    # Explicit VMEM budget (double-buffered x/out tiles + resident weights +
    # f32 intermediates / spill headroom), clamped for v7x's 64 MiB physical.
    vmem_est = (
        2 * tb * input_dim * x_bytes
        + 2 * tb * output_dim * 4
        + ((input_dim + h_p) * h_p + h_p * output_dim) * w_bytes
        + (2 * h_p + output_dim) * 4
        + 4 * tb * h_p * 4
    )
    vmem_limit = int(min(max(2 * vmem_est, 16 << 20), 48 << 20))

    flops = 2 * B * (input_dim * h_p + 2 * h_p * h_p + h_p * output_dim)
    bytes_accessed = int(
        B * input_dim * x_bytes + B * output_dim * 4
        + ((input_dim + h_p) * h_p + h_p * output_dim) * w_bytes
        + (2 * h_p + output_dim) * 4
    )

    # Weights/biases: constant index maps -> the pipeliner keeps them resident
    # and does not re-DMA them on later grid steps.
    def full(shape):
        return pl.BlockSpec(shape, lambda i: (0,) * len(shape))

    out = pl.pallas_call(
        _p2s_kernel,
        out_shape=jax.ShapeDtypeStruct((B, output_dim), jnp.float32),
        grid_spec=pltpu.PrefetchScalarGridSpec(
            num_scalar_prefetch=0,
            grid=grid,
            in_specs=[
                pl.BlockSpec((tb, input_dim), lambda i: (i, 0)),  # x tile (K=36)
                full((input_dim, h_p)),                           # W1
                full((1, h_p)),                                   # b1
                full((h_p, h_p)),                                 # W2
                full((1, h_p)),                                   # b2
                full((h_p, output_dim)),                          # Wo
                full((1, output_dim)),                            # bo
            ],
            out_specs=pl.BlockSpec((tb, output_dim), lambda i: (i, 0)),
        ),
        compiler_params=pltpu.CompilerParams(
            dimension_semantics=("parallel",),
            vmem_limit_bytes=vmem_limit,
        ),
        cost_estimate=pl.CostEstimate(
            flops=flops, transcendentals=0, bytes_accessed=bytes_accessed
        ),
    )(x, params["w1"], params["b1"], params["w2"], params["b2"],
      params["wo"], params["bo"])
    return out


# --------------------------------------------------------------------------
# Reference + init (nn.Linear-style U(-1/sqrt(fan_in), 1/sqrt(fan_in))).
# --------------------------------------------------------------------------
def init_params(key, input_dim=36, hidden=100, output_dim=100):
    ks = jax.random.split(key, 8)

    def linear(kw, kb, fan_in, fan_out):
        bound = 1.0 / jnp.sqrt(jnp.float32(fan_in))
        w = jax.random.uniform(kw, (fan_in, fan_out), jnp.float32, -bound, bound)
        b = jax.random.uniform(kb, (1, fan_out), jnp.float32, -bound, bound)
        return w, b

    w1, b1 = linear(ks[0], ks[1], input_dim, hidden)
    w2, b2 = linear(ks[2], ks[3], hidden, hidden)
    # fc3 exists in the module's __init__ but is unused in forward; omitted.
    wo, bo = linear(ks[6], ks[7], hidden, output_dim)
    return {"w1": w1, "b1": b1, "w2": w2, "b2": b2, "wo": wo, "bo": bo}


def p2s_reference(x, p):
    hi = jax.lax.Precision.HIGHEST
    y = jax.nn.relu(jnp.dot(x, p["w1"], precision=hi) + p["b1"])
    y = jax.nn.relu(jnp.dot(y, p["w2"], precision=hi) + p["b2"])
    y = jax.nn.relu(jnp.dot(y, p["w2"], precision=hi) + p["b2"])
    return jnp.dot(y, p["wo"], precision=hi) + p["bo"]


if __name__ == "__main__":
    key = jax.random.PRNGKey(0)
    k_params, k_x = jax.random.split(key)

    # Small demo shapes consistent with the module: input_dim=36, hidden=100,
    # output_dim=100.  B=50 -> tb=32 -> a 2-step parallel grid with a partial
    # tail block (exercises the masked tail store).
    B, INPUT_DIM, OUTPUT_DIM = 50, 36, 100
    raw = init_params(k_params, input_dim=INPUT_DIM, output_dim=OUTPUT_DIM)
    x = jax.random.normal(k_x, (B, INPUT_DIM), jnp.float32)

    ref = p2s_reference(x, raw)

    # Production path: bf16 MXU operands, f32 accumulation.
    params_bf16 = prepare_params(raw, matmul_dtype=jnp.bfloat16)
    out_bf16 = jax.block_until_ready(p2s_forward(x, params_bf16))
    assert out_bf16.shape == (B, OUTPUT_DIM)
    assert jnp.allclose(out_bf16, ref, atol=3e-2, rtol=3e-2), \
        "bf16-operand kernel mismatch vs reference"

    # f32-operand path for a tighter structural check.
    params_f32 = prepare_params(raw, matmul_dtype=jnp.float32)
    out_f32 = jax.block_until_ready(p2s_forward(x, params_f32))
    assert jnp.allclose(out_f32, ref, atol=2e-3, rtol=2e-3), \
        "f32-operand kernel mismatch vs reference"

    print("KERNEL_OK")
</pallas_src>

<mosaic_0001>
module attributes {stable_mosaic.version = 11 : i64} {
  func.func @_p2s_kernel(%arg0: i32, %arg1: memref<32x36xf32, #tpu.memory_space<vmem>>, %arg2: memref<36x128xbf16, #tpu.memory_space<vmem>>, %arg3: memref<1x128xf32, #tpu.memory_space<vmem>>, %arg4: memref<128x128xbf16, #tpu.memory_space<vmem>>, %arg5: memref<1x128xf32, #tpu.memory_space<vmem>>, %arg6: memref<128x100xbf16, #tpu.memory_space<vmem>>, %arg7: memref<1x100xf32, #tpu.memory_space<vmem>>, %arg8: memref<32x100xf32, #tpu.memory_space<vmem>>) attributes {dimension_semantics = [#tpu.dimension_semantics<parallel>], iteration_bounds = array<i64: 2>, scalar_prefetch = 0 : i64, scratch_operands = 0 : i64, tpu.core_type = #tpu.core_type<tc>, window_params = [{transform_indices = @transform_0, window_bounds = array<i64: 32, 36>}, {pipeline_mode = #tpu.pipeline_mode<synchronous>, transform_indices = @transform_1, window_bounds = array<i64: 36, 128>}, {pipeline_mode = #tpu.pipeline_mode<synchronous>, transform_indices = @transform_2, window_bounds = array<i64: 1, 128>}, {pipeline_mode = #tpu.pipeline_mode<synchronous>, transform_indices = @transform_3, window_bounds = array<i64: 128, 128>}, {pipeline_mode = #tpu.pipeline_mode<synchronous>, transform_indices = @transform_4, window_bounds = array<i64: 1, 128>}, {pipeline_mode = #tpu.pipeline_mode<synchronous>, transform_indices = @transform_5, window_bounds = array<i64: 128, 100>}, {pipeline_mode = #tpu.pipeline_mode<synchronous>, transform_indices = @transform_6, window_bounds = array<i64: 1, 100>}, {transform_indices = @transform_7, window_bounds = array<i64: 32, 100>}]} {
    %c0 = arith.constant 0 : index
    %c0_0 = arith.constant 0 : index
    %0 = vector.load %arg1[%c0, %c0_0] : memref<32x36xf32, #tpu.memory_space<vmem>>, vector<32x36xf32>
    %1 = arith.truncf %0 : vector<32x36xf32> to vector<32x36xbf16>
    %c0_1 = arith.constant 0 : index
    %c0_2 = arith.constant 0 : index
    %2 = vector.load %arg2[%c0_1, %c0_2] : memref<36x128xbf16, #tpu.memory_space<vmem>>, vector<36x128xbf16>
    %cst = arith.constant dense<0.000000e+00> : vector<32x128xf32>
    %3 = tpu.matmul %1, %2, %cst {dimension_numbers = #tpu.dot_dimension_numbers<[1], [0], [0], [1], [0, 0, 1, 1], [], []>} : vector<32x36xbf16>, vector<36x128xbf16>, vector<32x128xf32> -> vector<32x128xf32>
    %c0_3 = arith.constant 0 : index
    %c0_4 = arith.constant 0 : index
    %4 = vector.load %arg3[%c0_3, %c0_4] : memref<1x128xf32, #tpu.memory_space<vmem>>, vector<1x128xf32>
    %5 = vector.broadcast %4 : vector<1x128xf32> to vector<32x128xf32>
    %6 = arith.addf %3, %5 : vector<32x128xf32>
    %cst_5 = arith.constant 0.000000e+00 : f32
    %7 = vector.broadcast %cst_5 : f32 to vector<32x128xf32>
    %8 = arith.maximumf %6, %7 : vector<32x128xf32>
    %9 = arith.truncf %8 : vector<32x128xf32> to vector<32x128xbf16>
    %c0_6 = arith.constant 0 : index
    %c0_7 = arith.constant 0 : index
    %10 = vector.load %arg4[%c0_6, %c0_7] : memref<128x128xbf16, #tpu.memory_space<vmem>>, vector<128x128xbf16>
    %cst_8 = arith.constant dense<0.000000e+00> : vector<32x128xf32>
    %11 = tpu.matmul %9, %10, %cst_8 {dimension_numbers = #tpu.dot_dimension_numbers<[1], [0], [0], [1], [0, 0, 1, 1], [], []>} : vector<32x128xbf16>, vector<128x128xbf16>, vector<32x128xf32> -> vector<32x128xf32>
    %c0_9 = arith.constant 0 : index
    %c0_10 = arith.constant 0 : index
    %12 = vector.load %arg5[%c0_9, %c0_10] : memref<1x128xf32, #tpu.memory_space<vmem>>, vector<1x128xf32>
    %13 = vector.broadcast %12 : vector<1x128xf32> to vector<32x128xf32>
    %14 = arith.addf %11, %13 : vector<32x128xf32>
    %cst_11 = arith.constant 0.000000e+00 : f32
    %15 = vector.broadcast %cst_11 : f32 to vector<32x128xf32>
    %16 = arith.maximumf %14, %15 : vector<32x128xf32>
    %17 = arith.truncf %16 : vector<32x128xf32> to vector<32x128xbf16>
    %c0_12 = arith.constant 0 : index
    %c0_13 = arith.constant 0 : index
    %18 = vector.load %arg4[%c0_12, %c0_13] : memref<128x128xbf16, #tpu.memory_space<vmem>>, vector<128x128xbf16>
    %cst_14 = arith.constant dense<0.000000e+00> : vector<32x128xf32>
    %19 = tpu.matmul %17, %18, %cst_14 {dimension_numbers = #tpu.dot_dimension_numbers<[1], [0], [0], [1], [0, 0, 1, 1], [], []>} : vector<32x128xbf16>, vector<128x128xbf16>, vector<32x128xf32> -> vector<32x128xf32>
    %c0_15 = arith.constant 0 : index
    %c0_16 = arith.constant 0 : index
    %20 = vector.load %arg5[%c0_15, %c0_16] : memref<1x128xf32, #tpu.memory_space<vmem>>, vector<1x128xf32>
    %21 = vector.broadcast %20 : vector<1x128xf32> to vector<32x128xf32>
    %22 = arith.addf %19, %21 : vector<32x128xf32>
    %cst_17 = arith.constant 0.000000e+00 : f32
    %23 = vector.broadcast %cst_17 : f32 to vector<32x128xf32>
    %24 = arith.maximumf %22, %23 : vector<32x128xf32>
    %25 = arith.truncf %24 : vector<32x128xf32> to vector<32x128xbf16>
    %c0_18 = arith.constant 0 : index
    %c0_19 = arith.constant 0 : index
    %26 = vector.load %arg6[%c0_18, %c0_19] : memref<128x100xbf16, #tpu.memory_space<vmem>>, vector<128x100xbf16>
    %cst_20 = arith.constant dense<0.000000e+00> : vector<32x100xf32>
    %27 = tpu.matmul %25, %26, %cst_20 {dimension_numbers = #tpu.dot_dimension_numbers<[1], [0], [0], [1], [0, 0, 1, 1], [], []>} : vector<32x128xbf16>, vector<128x100xbf16>, vector<32x100xf32> -> vector<32x100xf32>
    %c0_21 = arith.constant 0 : index
    %c0_22 = arith.constant 0 : index
    %28 = vector.load %arg7[%c0_21, %c0_22] : memref<1x100xf32, #tpu.memory_space<vmem>>, vector<1x100xf32>
    %29 = vector.broadcast %28 : vector<1x100xf32> to vector<32x100xf32>
    %30 = arith.addf %27, %29 : vector<32x100xf32>
    %c0_23 = arith.constant 0 : index
    %c0_24 = arith.constant 0 : index
    %31 = vector.load %arg8[%c0_23, %c0_24] : memref<32x100xf32, #tpu.memory_space<vmem>>, vector<32x100xf32>
    tpu.vector_store %arg8[%c0_23, %c0_24], %30 {strides = array<i32>} : memref<32x100xf32, #tpu.memory_space<vmem>>, vector<32x100xf32>,
    return
  }
  func.func @transform_0(%arg0: i32) -> (i32, i32) {
    %c0_i32 = arith.constant 0 : i32
    %c0_i32_0 = arith.constant 0 : i32
    return %arg0, %c0_i32 : i32, i32
  }
  func.func @transform_1(%arg0: i32) -> (i32, i32) {
    %c0_i32 = arith.constant 0 : i32
    %c0_i32_0 = arith.constant 0 : i32
    %c0_i32_1 = arith.constant 0 : i32
    return %c0_i32, %c0_i32_0 : i32, i32
  }
  func.func @transform_2(%arg0: i32) -> (i32, i32) {
    %c0_i32 = arith.constant 0 : i32
    %c0_i32_0 = arith.constant 0 : i32
    %c0_i32_1 = arith.constant 0 : i32
    return %c0_i32, %c0_i32_0 : i32, i32
  }
  func.func @transform_3(%arg0: i32) -> (i32, i32) {
    %c0_i32 = arith.constant 0 : i32
    %c0_i32_0 = arith.constant 0 : i32
    %c0_i32_1 = arith.constant 0 : i32
    return %c0_i32, %c0_i32_0 : i32, i32
  }
  func.func @transform_4(%arg0: i32) -> (i32, i32) {
    %c0_i32 = arith.constant 0 : i32
    %c0_i32_0 = arith.constant 0 : i32
    %c0_i32_1 = arith.constant 0 : i32
    return %c0_i32, %c0_i32_0 : i32, i32
  }
  func.func @transform_5(%arg0: i32) -> (i32, i32) {
    %c0_i32 = arith.constant 0 : i32
    %c0_i32_0 = arith.constant 0 : i32
    %c0_i32_1 = arith.constant 0 : i32
    return %c0_i32, %c0_i32_0 : i32, i32
  }
  func.func @transform_6(%arg0: i32) -> (i32, i32) {
    %c0_i32 = arith.constant 0 : i32
    %c0_i32_0 = arith.constant 0 : i32
    %c0_i32_1 = arith.constant 0 : i32
    return %c0_i32, %c0_i32_0 : i32, i32
  }
  func.func @transform_7(%arg0: i32) -> (i32, i32) {
    %c0_i32 = arith.constant 0 : i32
    %c0_i32_0 = arith.constant 0 : i32
    return %arg0, %c0_i32 : i32, i32
  }
}

</mosaic_0001>

<llo_original>
// kernel: tpu_custom_call.1
$region0: #{tpu_custom_call.1}
  #allocation0 [shape = 'u32[]', space=smem, size = 0x4, offset = 0x4, fixed_abs, tag = 'smem constant byte address 0x4 - core index']
  #allocation1 [shape = 'u32[144,128]{1,0:T(1,128)}', space=vmem, size = 0x12000, scoped, tag = 'internal scratch']
  %s0 = inlined_call_operand.vmem [shape: f32[50,36], index: 0, kind: input, shape index: {}]
  %s1 = inlined_call_operand.vmem [shape: bf16[36,128], index: 1, kind: input, shape index: {}]
  %s2 = inlined_call_operand.vmem [shape: f32[1,128], index: 2, kind: input, shape index: {}]
  %s3 = inlined_call_operand.vmem [shape: bf16[128,128], index: 3, kind: input, shape index: {}]
  %s4 = inlined_call_operand.vmem [shape: f32[1,128], index: 4, kind: input, shape index: {}]
  %s5 = inlined_call_operand.vmem [shape: bf16[128,100], index: 5, kind: input, shape index: {}]
  %s6 = inlined_call_operand.vmem [shape: f32[1,100], index: 6, kind: input, shape index: {}]
  %s7 = inlined_call_operand.hbm [shape: f32[50,100], index: 7, kind: output, shape index: {}]
  %s8 = sld [smem:[#allocation0]]
  $region61: #{tpu_custom_call.1} parent=0
    _
  %s10 = ssub.s32 1, %s8
  %s11 = scalar_select 0, %s10, %s8
  $region1: #{tpu_custom_call.1} parent=0
    #allocation2 [shape = 'u8[32768]{0}', space=vmem, size = 0x8000, scoped, tag = 'output window, operand 0']
    #allocation3 [shape = 's32[2]{0}', space=sflag, size = 0x8, scoped, tag = 'scoped memory for tpu_custom_call.1']
    %12 = vsyncpa [#allocation3], 0
    %s13 = scalar_lea.sflag [#allocation3], 1
    %14 = vsyncpa %s13, 0
    loop: start=0, step=1, limit=4
    $region2: #{tpu_custom_call.1} parent=1 // loop_pre_header
      _
    $region3: #{tpu_custom_call.1} parent=1 // loop_header
      %s16 = sphi 0, %s20
      %p17 = scmp.ge.s32.totalorder %s16, 4
      %s26 = sphi 0, %s28
      %s29 = sphi 0, %s26
      %s30 = sphi 0, %s29
      %s46 = sphi 0, %s30
      %s50 = sphi 0, %s50
      %s52 = sphi 0, %s50
      %s53 = sphi 0, %s52
      %s67 = sphi 0, %s53
      %s71 = sphi 0, %s71
      %s73 = sphi 0, %s71
      %s74 = sphi 0, %s73
      %s88 = sphi 0, %s74
      %s92 = sphi 0, %s92
      %s94 = sphi 0, %s92
      %s95 = sphi 0, %s94
      %s109 = sphi 0, %s95
      %s113 = sphi 0, %s113
      %s115 = sphi 0, %s113
      %s116 = sphi 0, %s115
      %s130 = sphi 0, %s116
      %s134 = sphi 0, %s134
      %s136 = sphi 0, %s134
      %s137 = sphi 0, %s136
      %s151 = sphi 0, %s137
      %s155 = sphi 0, %s155
      %s157 = sphi 0, %s155
      %s158 = sphi 0, %s157
      %s172 = sphi 0, %s158
      %s178 = sphi 0, %s180
      %s181 = sphi 0, %s178
      %s182 = sphi 0, %s181
      %s198 = sphi 0, %s182
    $region4: #{tpu_custom_call.1} parent=1 // loop_header_branch
      %19 = sbr.rel (%p17) target = $region8
    $region5: #{tpu_custom_call.1} parent=1 // loop_body
      %s21 = ssub.s32 %s16, 1
      %s22 = ssub.s32 %s16, 2
      %s23 = sadd.s32 %s16, 1
      %s24 = ssub.s32 %s16, %s23
      %p25 = scmp.eq.s32.totalorder %s24, 0
      %s27 = sadd.s32 %s26, 1
      %s28 = scalar_select %p25, %s26, %s27
      %p31 = pneg %p25
      %p32 = scmp.eq.s32.totalorder %s16, 1
      %p33 = por %p31, %p32
      %p34 = scmp.ne.s32.totalorder %s26, %s29
      %p35 = scmp.eq.s32.totalorder %s16, 0
      %p36 = por %p34, %p35
      %p37 = scmp.ne.s32.totalorder %s26, %s29
      %p38 = scmp.eq.s32.totalorder %s21, 1
      %p39 = por %p37, %p38
      %p40 = scmp.ne.s32.totalorder %s29, %s30
      %p41 = scmp.eq.s32.totalorder %s21, 0
      %p42 = por %p40, %p41
      %p43 = scmp.ne.s32.totalorder %s29, %s30
      %p44 = scmp.eq.s32.totalorder %s22, 1
      %p45 = por %p43, %p44
      %p47 = scmp.ne.s32.totalorder %s30, %s46
      %p48 = scmp.eq.s32.totalorder %s22, 0
      %p49 = por %p47, %p48
      %s51 = sadd.s32 %s50, 1
      %p54 = scmp.eq.s32.totalorder %s16, 1
      %p55 = scmp.ne.s32.totalorder %s50, %s52
      %p56 = scmp.eq.s32.totalorder %s16, 0
      %p57 = por %p55, %p56
      %p58 = scmp.ne.s32.totalorder %s50, %s52
      %p59 = scmp.eq.s32.totalorder %s21, 1
      %p60 = por %p58, %p59
      %p61 = scmp.ne.s32.totalorder %s52, %s53
      %p62 = scmp.eq.s32.totalorder %s21, 0
      %p63 = por %p61, %p62
      %p64 = scmp.ne.s32.totalorder %s52, %s53
      %p65 = scmp.eq.s32.totalorder %s22, 1
      %p66 = por %p64, %p65
      %p68 = scmp.ne.s32.totalorder %s53, %s67
      %p69 = scmp.eq.s32.totalorder %s22, 0
      %p70 = por %p68, %p69
      %s72 = sadd.s32 %s71, 1
      %p75 = scmp.eq.s32.totalorder %s16, 1
      %p76 = scmp.ne.s32.totalorder %s71, %s73
      %p77 = scmp.eq.s32.totalorder %s16, 0
      %p78 = por %p76, %p77
      %p79 = scmp.ne.s32.totalorder %s71, %s73
      %p80 = scmp.eq.s32.totalorder %s21, 1
      %p81 = por %p79, %p80
      %p82 = scmp.ne.s32.totalorder %s73, %s74
      %p83 = scmp.eq.s32.totalorder %s21, 0
      %p84 = por %p82, %p83
      %p85 = scmp.ne.s32.totalorder %s73, %s74
      %p86 = scmp.eq.s32.totalorder %s22, 1
      %p87 = por %p85, %p86
      %p89 = scmp.ne.s32.totalorder %s74, %s88
      %p90 = scmp.eq.s32.totalorder %s22, 0
      %p91 = por %p89, %p90
      %s93 = sadd.s32 %s92, 1
      %p96 = scmp.eq.s32.totalorder %s16, 1
      %p97 = scmp.ne.s32.totalorder %s92, %s94
      %p98 = scmp.eq.s32.totalorder %s16, 0
      %p99 = por %p97, %p98
      %p100 = scmp.ne.s32.totalorder %s92, %s94
      %p101 = scmp.eq.s32.totalorder %s21, 1
      %p102 = por %p100, %p101
      %p103 = scmp.ne.s32.totalorder %s94, %s95
      %p104 = scmp.eq.s32.totalorder %s21, 0
      %p105 = por %p103, %p104
      %p106 = scmp.ne.s32.totalorder %s94, %s95
      %p107 = scmp.eq.s32.totalorder %s22, 1
      %p108 = por %p106, %p107
      %p110 = scmp.ne.s32.totalorder %s95, %s109
      %p111 = scmp.eq.s32.totalorder %s22, 0
      %p112 = por %p110, %p111
      %s114 = sadd.s32 %s113, 1
      %p117 = scmp.eq.s32.totalorder %s16, 1
      %p118 = scmp.ne.s32.totalorder %s113, %s115
      %p119 = scmp.eq.s32.totalorder %s16, 0
      %p120 = por %p118, %p119
      %p121 = scmp.ne.s32.totalorder %s113, %s115
      %p122 = scmp.eq.s32.totalorder %s21, 1
      %p123 = por %p121, %p122
      %p124 = scmp.ne.s32.totalorder %s115, %s116
      %p125 = scmp.eq.s32.totalorder %s21, 0
      %p126 = por %p124, %p125
      %p127 = scmp.ne.s32.totalorder %s115, %s116
      %p128 = scmp.eq.s32.totalorder %s22, 1
      %p129 = por %p127, %p128
      %p131 = scmp.ne.s32.totalorder %s116, %s130
      %p132 = scmp.eq.s32.totalorder %s22, 0
      %p133 = por %p131, %p132
      %s135 = sadd.s32 %s134, 1
      %p138 = scmp.eq.s32.totalorder %s16, 1
      %p139 = scmp.ne.s32.totalorder %s134, %s136
      %p140 = scmp.eq.s32.totalorder %s16, 0
      %p141 = por %p139, %p140
      %p142 = scmp.ne.s32.totalorder %s134, %s136
      %p143 = scmp.eq.s32.totalorder %s21, 1
      %p144 = por %p142, %p143
      %p145 = scmp.ne.s32.totalorder %s136, %s137
      %p146 = scmp.eq.s32.totalorder %s21, 0
      %p147 = por %p145, %p146
      %p148 = scmp.ne.s32.totalorder %s136, %s137
      %p149 = scmp.eq.s32.totalorder %s22, 1
      %p150 = por %p148, %p149
      %p152 = scmp.ne.s32.totalorder %s137, %s151
      %p153 = scmp.eq.s32.totalorder %s22, 0
      %p154 = por %p152, %p153
      %s156 = sadd.s32 %s155, 1
      %p159 = scmp.eq.s32.totalorder %s16, 1
      %p160 = scmp.ne.s32.totalorder %s155, %s157
      %p161 = scmp.eq.s32.totalorder %s16, 0
      %p162 = por %p160, %p161
      %p163 = scmp.ne.s32.totalorder %s155, %s157
      %p164 = scmp.eq.s32.totalorder %s21, 1
      %p165 = por %p163, %p164
      %p166 = scmp.ne.s32.totalorder %s157, %s158
      %p167 = scmp.eq.s32.totalorder %s21, 0
      %p168 = por %p166, %p167
      %p169 = scmp.ne.s32.totalorder %s157, %s158
      %p170 = scmp.eq.s32.totalorder %s22, 1
      %p171 = por %p169, %p170
      %p173 = scmp.ne.s32.totalorder %s158, %s172
      %p174 = scmp.eq.s32.totalorder %s22, 0
      %p175 = por %p173, %p174
      %s176 = ssub.s32 %s16, %s23
      %p177 = scmp.eq.s32.totalorder %s176, 0
      %s179 = sadd.s32 %s178, 1
      %s180 = scalar_select %p177, %s178, %s179
      %p183 = pneg %p177
      %p184 = scmp.eq.s32.totalorder %s16, 1
      %p185 = por %p183, %p184
      %p186 = scmp.ne.s32.totalorder %s178, %s181
      %p187 = scmp.eq.s32.totalorder %s16, 0
      %p188 = por %p186, %p187
      %p189 = scmp.ne.s32.totalorder %s178, %s181
      %p190 = scmp.eq.s32.totalorder %s21, 1
      %p191 = por %p189, %p190
      %p192 = scmp.ne.s32.totalorder %s181, %s182
      %p193 = scmp.eq.s32.totalorder %s21, 0
      %p194 = por %p192, %p193
      %p195 = scmp.ne.s32.totalorder %s181, %s182
      %p196 = scmp.eq.s32.totalorder %s22, 1
      %p197 = por %p195, %p196
      %p199 = scmp.ne.s32.totalorder %s182, %s198
      %p200 = scmp.eq.s32.totalorder %s22, 0
      %p201 = por %p199, %p200
      %p202 = scmp.le.s32.totalorder 1, %s16
      %p203 = scmp.lt.s32.totalorder %s16, 3
      %p204 = pnand %p202, %p203
      %p205 = pneg %p204
      // Predicated region
      $region9: #{tpu_custom_call.1} parent=5 // pred_check
        _
      $region10: #{tpu_custom_call.1} parent=5 // pred_check_branch
        %207 = sbr.rel (%p204) target = $region12
      $region11: #{tpu_custom_call.1} parent=5 // pred_region
        %s208 = ssub.s32 %s16, 1
        // Predicated region
        $region13: #{tpu_custom_call.1} parent=11 // pred_check
          %p209 = pneg %p63
        $region14: #{tpu_custom_call.1} parent=11 // pred_check_branch
          %211 = sbr.rel (%p209) target = $region16
        $region15: #{tpu_custom_call.1} parent=11 // pred_region
          _
        $region16: #{tpu_custom_call.1} parent=11 // pred_fallthru
          _
        // Predicated region
        $region17: #{tpu_custom_call.1} parent=11 // pred_check
          %p212 = pneg %p84
        $region18: #{tpu_custom_call.1} parent=11 // pred_check_branch
          %214 = sbr.rel (%p212) target = $region20
        $region19: #{tpu_custom_call.1} parent=11 // pred_region
          _
        $region20: #{tpu_custom_call.1} parent=11 // pred_fallthru
          _
        // Predicated region
        $region21: #{tpu_custom_call.1} parent=11 // pred_check
          %p215 = pneg %p105
        $region22: #{tpu_custom_call.1} parent=11 // pred_check_branch
          %217 = sbr.rel (%p215) target = $region24
        $region23: #{tpu_custom_call.1} parent=11 // pred_region
          _
        $region24: #{tpu_custom_call.1} parent=11 // pred_fallthru
          _
        // Predicated region
        $region25: #{tpu_custom_call.1} parent=11 // pred_check
          %p218 = pneg %p126
        $region26: #{tpu_custom_call.1} parent=11 // pred_check_branch
          %220 = sbr.rel (%p218) target = $region28
        $region27: #{tpu_custom_call.1} parent=11 // pred_region
          _
        $region28: #{tpu_custom_call.1} parent=11 // pred_fallthru
          _
        // Predicated region
        $region29: #{tpu_custom_call.1} parent=11 // pred_check
          %p221 = pneg %p147
        $region30: #{tpu_custom_call.1} parent=11 // pred_check_branch
          %223 = sbr.rel (%p221) target = $region32
        $region31: #{tpu_custom_call.1} parent=11 // pred_region
          _
        $region32: #{tpu_custom_call.1} parent=11 // pred_fallthru
          _
        // Predicated region
        $region33: #{tpu_custom_call.1} parent=11 // pred_check
          %p224 = pneg %p168
        $region34: #{tpu_custom_call.1} parent=11 // pred_check_branch
          %226 = sbr.rel (%p224) target = $region36
        $region35: #{tpu_custom_call.1} parent=11 // pred_region
          _
        $region36: #{tpu_custom_call.1} parent=11 // pred_fallthru
          _
      $region12: #{tpu_custom_call.1} parent=5 // pred_fallthru
        _
      %p227 = scmp.lt.s32.totalorder %s16, 2
      // Predicated region
      $region37: #{tpu_custom_call.1} parent=5 // pred_check
        %p228 = pneg %p227
      $region38: #{tpu_custom_call.1} parent=5 // pred_check_branch
        %230 = sbr.rel (%p228) target = $region40
      $region39: #{tpu_custom_call.1} parent=5 // pred_region
        // Predicated region
        $region41: #{tpu_custom_call.1} parent=39 // pred_check
          %p231 = pneg %p36
        $region42: #{tpu_custom_call.1} parent=39 // pred_check_branch
          %233 = sbr.rel (%p231) target = $region44
        $region43: #{tpu_custom_call.1} parent=39 // pred_region
          %s234 = smul.u32 4, %s16
          %s235 = ssub.s32 7, %s234
          %p236 = scmp.lt.s32.totalorder %s235, 4
          %s237 = scalar_select %p236, %s235, 4
          %s238 = smul.u32 128, %s237
          %p239 = scmp.lt.s32.totalorder %s234, 6
          %s240 = scalar_select %p239, %s234, 6
          %s241 = smul.addr %s240, 8
          %s242 = scalar_lea.vmem %s0, %s241
          %s243 = smul.u32 4, %s16
          %s244 = ssub.s32 7, %s243
          %p245 = scmp.lt.s32.totalorder %s244, 4
          %s246 = scalar_select %p245, %s244, 4
          %s247 = smul.u32 128, %s246
        $region44: #{tpu_custom_call.1} parent=39 // pred_fallthru
          _
      $region40: #{tpu_custom_call.1} parent=5 // pred_fallthru
        _
      %p248 = scmp.le.s32.totalorder 1, %s16
      %p249 = scmp.lt.s32.totalorder %s16, 3
      %p250 = pnand %p248, %p249
      %p251 = pneg %p250
      // Predicated region
      $region45: #{tpu_custom_call.1} parent=5 // pred_check
        _
      $region46: #{tpu_custom_call.1} parent=5 // pred_check_branch
        %253 = sbr.rel (%p250) target = $region48
      $region47: #{tpu_custom_call.1} parent=5 // pred_region
        %s254 = ssub.s32 %s16, 1
        %s255 = smul.u32 4, %s21
        %s256 = ssub.s32 7, %s255
        %p257 = scmp.lt.s32.totalorder %s256, 4
        %s258 = scalar_select %p257, %s256, 4
        %s259 = smul.u32 128, %s258
        %p260 = scmp.lt.s32.totalorder %s255, 6
        %s261 = scalar_select %p260, %s255, 6
        %s262 = smul.addr %s261, 8
        %s263 = scalar_lea.vmem %s0, %s262
        %p264 = pneg %p42
        %p265 = pneg %p39
        %p266 = pneg %p63
        %p267 = pneg %p60
        %p268 = pneg %p84
        %p269 = pneg %p81
        %p270 = pneg %p105
        %p271 = pneg %p102
        %p272 = pneg %p126
        %p273 = pneg %p123
        %p274 = pneg %p147
        %p275 = pneg %p144
        %p276 = pneg %p168
        %p277 = pneg %p165
        %p278 = pneg %p194
        %p279 = pneg %p191
        %s280 = sand.u32 %s181, 1
        %s281 = scalar_lea.sflag [#allocation3], %s280
        %s282 = sand.u32 %s181, 1
        %s283 = smul.addr %s282, 32
        %s284 = scalar_lea.vmem [#allocation2], %s283
        %s285 = smul.u32 4, %s21
        %s286 = ssub.s32 7, %s285
        %p287 = scmp.lt.s32.totalorder %s286, 4
        %s288 = scalar_select %p287, %s286, 4
        %s289 = smul.u32 128, %s288
        %p290 = scmp.lt.s32.totalorder %s285, 6
        %s291 = scalar_select %p290, %s285, 6
        %s292 = smul.addr %s291, 8
        %s293 = scalar_lea.vmem %s0, %s292
        %s294 = smul.u32 4, %s21
        %s295 = ssub.s32 7, %s294
        %p296 = scmp.lt.s32.totalorder %s295, 4
        %s297 = scalar_select %p296, %s295, 4
        %s298 = smul.u32 128, %s297
        %s299 = smul.u32 4, %s21
        %s300 = ssub.s32 7, %s299
        %p301 = scmp.lt.s32.totalorder %s300, 4
        %s302 = scalar_select %p301, %s300, 4
        %s303 = smul.u32 128, %s302
        %v305 = vld [vmem:[%s293] sm:$0xff]
        %v306 = vld [vmem:[%s293 + $0x8] sm:$0xff]
        %v307 = vld [vmem:[%s293 + $0x10] sm:$0xff]
        %v308 = vld [vmem:[%s293 + $0x18] sm:$0xff]
        %v309 = vpack.c.bf16 %v306, %v305
        %v310 = vpack.c.bf16 %v308, %v307
        %v311 = vld [vmem:[%s1] sm:$0xf]
        %v312 = vld [vmem:[%s1 + $0x4] sm:$0xf]
        %v313 = vld [vmem:[%s1 + $0x8] sm:$0xf]
        %v314 = vld [vmem:[%s1 + $0xc] sm:$0xf]
        %v315 = vld [vmem:[%s1 + $0x10] sm:$0x3]
        %v316 = vld [vmem:[%s2] sm:$0x1]
        %v318 = vlaneseq
        %v319 = vshrl.u32 %v318, 7
        %v320 = vsub.s32 0, %v319
        %v321 = vrot.slane %v316, %v320
        %v328 = vunpack.c.l.b16 %v311
        %v329 = vunpack.c.l.b16 %v312
        %v330 = vunpack.c.l.b16 %v313
        %v331 = vunpack.c.l.b16 %v314
        %v332 = vunpack.c.l.b16 %v315
        %v333 = vpack.c.b16 %v329, %v328
        %v334 = vpack.c.b16 %v331, %v330
        %v335 = vpack.c.b16 %v332, %v332
        %vm338 = vcmask 293888
        %v340 = vsel %vm338, %v309, 0
        %v343 = vsel %vm338, %v310, 0
        %vm345 = vcmask 1041408
        %v347 = vsel %vm345, %v335, 0
        %349 = vmatprep.subr.bf16.mxu0 0
        %350 = vmatpush1.bf16.msra.mxu0 %v333
        %351 = vmatprep.subr.bf16.mxu0 0
        %352 = vmatpush1.bf16.msra.mxu0 %v334
        %353 = vmatprep.subr.bf16.mxu0 0
        %354 = vmatpush1.bf16.msra.mxu0 %v347
        %355 = vmatprep.subr.bf16.mxu0 0
        %356 = vmatpush1.bf16.msra.mxu0 0
        %357 = vmatprep.subr.bf16.mxu0 0
        %358 = vmatpush1.bf16.msra.mxu0 0
        %359 = vmatprep.subr.bf16.mxu0 0
        %360 = vmatpush1.bf16.msra.mxu0 0
        %361 = vmatprep.subr.bf16.mxu0 0
        %362 = vmatpush1.bf16.msra.mxu0 0
        %363 = vmatprep.subr.bf16.mxu0 0
        %364 = vmatpush1.bf16.msra.mxu0 0
        %365 = vmatprep.subr.bf16.mxu0 0
        %366 = vmatpush1.bf16.msra.mxu0 0
        %367 = vmatprep.subr.bf16.mxu0 0
        %368 = vmatpush1.bf16.msra.mxu0 0
        %369 = vmatprep.subr.bf16.mxu0 0
        %370 = vmatpush1.bf16.msra.mxu0 0
        %371 = vmatprep.subr.bf16.mxu0 0
        %372 = vmatpush1.bf16.msra.mxu0 0
        %373 = vmatprep.subr.bf16.mxu0 0
        %374 = vmatpush1.bf16.msra.mxu0 0
        %375 = vmatprep.subr.bf16.mxu0 0
        %376 = vmatpush1.bf16.msra.mxu0 0
        %377 = vmatprep.subr.bf16.mxu0 0
        %378 = vmatpush1.bf16.msra.mxu0 0
        %379 = vmatprep.subr.bf16.mxu0 0
        %380 = vmatpush1.bf16.msra.mxu0 0
        %381 = vmatprep.mubr.bf16.mxu0 0
        %382 = vmatmul.mubr.bf16.gmra.mrb[0].mxu0 %v340
        %v383 = vpop.f32.mrb[0].mxu0
        %v384 = vadd.f32 %v321, %v383
        %v385 = vpop.f32.mrb[0].mxu0
        %v386 = vpop.f32.mrb[0].mxu0
        %v387 = vadd.f32 %v321, %v386
        %v388 = vpop.f32.mrb[0].mxu0
        %389 = vmatprep.mubr.bf16.mxu0 0
        %390 = vmatmul.mubr.bf16.gmra.mrb[0].mxu0 %v343
        %v391 = vpop.f32.mrb[0].mxu0
        %v392 = vadd.f32 %v321, %v391
        %v393 = vpop.f32.mrb[0].mxu0
        %v394 = vpop.f32.mrb[0].mxu0
        %v395 = vadd.f32 %v321, %v394
        %v396 = vpop.f32.mrb[0].mxu0
        %397 = vdwg.mxu0
        %v398 = vmax.f32 %v384, 0.0
        %v399 = vmax.f32 %v387, 0.0
        %v400 = vmax.f32 %v392, 0.0
        %v401 = vmax.f32 %v395, 0.0
        %v402 = vpack.c.bf16 %v399, %v398
        %v403 = vpack.c.bf16 %v401, %v400
        %v404 = vld [vmem:[%s3] sm:$0xf]
        %v405 = vld [vmem:[%s3 + $0x4] sm:$0xf]
        %v406 = vld [vmem:[%s3 + $0x8] sm:$0xf]
        %v407 = vld [vmem:[%s3 + $0xc] sm:$0xf]
        %v408 = vld [vmem:[%s3 + $0x10] sm:$0xf]
        %v409 = vld [vmem:[%s3 + $0x14] sm:$0xf]
        %v410 = vld [vmem:[%s3 + $0x18] sm:$0xf]
        %v411 = vld [vmem:[%s3 + $0x1c] sm:$0xf]
        %v412 = vld [vmem:[%s3 + $0x20] sm:$0xf]
        %v413 = vld [vmem:[%s3 + $0x24] sm:$0xf]
        %v414 = vld [vmem:[%s3 + $0x28] sm:$0xf]
        %v415 = vld [vmem:[%s3 + $0x2c] sm:$0xf]
        %v416 = vld [vmem:[%s3 + $0x30] sm:$0xf]
        %v417 = vld [vmem:[%s3 + $0x34] sm:$0xf]
        %v418 = vld [vmem:[%s3 + $0x38] sm:$0xf]
        %v419 = vld [vmem:[%s3 + $0x3c] sm:$0xf]
        %v420 = vld [vmem:[%s4] sm:$0x1]
        %v422 = vlaneseq
        %v423 = vshrl.u32 %v422, 7
        %v424 = vsub.s32 0, %v423
        %v425 = vrot.slane %v420, %v424
        %v443 = vunpack.c.l.b16 %v404
        %v444 = vunpack.c.l.b16 %v405
        %v445 = vunpack.c.l.b16 %v406
        %v446 = vunpack.c.l.b16 %v407
        %v447 = vunpack.c.l.b16 %v408
        %v448 = vunpack.c.l.b16 %v409
        %v449 = vunpack.c.l.b16 %v410
        %v450 = vunpack.c.l.b16 %v411
        %v451 = vunpack.c.l.b16 %v412
        %v452 = vunpack.c.l.b16 %v413
        %v453 = vunpack.c.l.b16 %v414
        %v454 = vunpack.c.l.b16 %v415
        %v455 = vunpack.c.l.b16 %v416
        %v456 = vunpack.c.l.b16 %v417
        %v457 = vunpack.c.l.b16 %v418
        %v458 = vunpack.c.l.b16 %v419
        %v459 = vpack.c.b16 %v444, %v443
        %v460 = vpack.c.b16 %v446, %v445
        %v461 = vpack.c.b16 %v448, %v447
        %v462 = vpack.c.b16 %v450, %v449
        %v463 = vpack.c.b16 %v452, %v451
        %v464 = vpack.c.b16 %v454, %v453
        %v465 = vpack.c.b16 %v456, %v455
        %v466 = vpack.c.b16 %v458, %v457
        %475 = vmatprep.subr.bf16.mxu0 0
        %476 = vmatpush1.bf16.msra.mxu0 %v459
        %477 = vmatprep.subr.bf16.mxu0 0
        %478 = vmatpush1.bf16.msra.mxu0 %v460
        %479 = vmatprep.subr.bf16.mxu0 0
        %480 = vmatpush1.bf16.msra.mxu0 %v461
        %481 = vmatprep.subr.bf16.mxu0 0
        %482 = vmatpush1.bf16.msra.mxu0 %v462
        %483 = vmatprep.subr.bf16.mxu0 0
        %484 = vmatpush1.bf16.msra.mxu0 %v463
        %485 = vmatprep.subr.bf16.mxu0 0
        %486 = vmatpush1.bf16.msra.mxu0 %v464
        %487 = vmatprep.subr.bf16.mxu0 0
        %488 = vmatpush1.bf16.msra.mxu0 %v465
        %489 = vmatprep.subr.bf16.mxu0 0
        %490 = vmatpush1.bf16.msra.mxu0 %v466
        %491 = vmatprep.subr.bf16.mxu0 0
        %492 = vmatpush1.bf16.msra.mxu0 0
        %493 = vmatprep.subr.bf16.mxu0 0
        %494 = vmatpush1.bf16.msra.mxu0 0
        %495 = vmatprep.subr.bf16.mxu0 0
        %496 = vmatpush1.bf16.msra.mxu0 0
        %497 = vmatprep.subr.bf16.mxu0 0
        %498 = vmatpush1.bf16.msra.mxu0 0
        %499 = vmatprep.subr.bf16.mxu0 0
        %500 = vmatpush1.bf16.msra.mxu0 0
        %501 = vmatprep.subr.bf16.mxu0 0
        %502 = vmatpush1.bf16.msra.mxu0 0
        %503 = vmatprep.subr.bf16.mxu0 0
        %504 = vmatpush1.bf16.msra.mxu0 0
        %505 = vmatprep.subr.bf16.mxu0 0
        %506 = vmatpush1.bf16.msra.mxu0 0
        %507 = vmatprep.mubr.bf16.mxu0 0
        %508 = vmatmul.mubr.bf16.gmra.mrb[0].mxu0 %v402
        %v509 = vpop.f32.mrb[0].mxu0
        %v510 = vadd.f32 %v425, %v509
        %v511 = vpop.f32.mrb[0].mxu0
        %v512 = vpop.f32.mrb[0].mxu0
        %v513 = vadd.f32 %v425, %v512
        %v514 = vpop.f32.mrb[0].mxu0
        %515 = vmatprep.mubr.bf16.mxu0 0
        %516 = vmatmul.mubr.bf16.gmra.mrb[0].mxu0 %v403
        %v517 = vpop.f32.mrb[0].mxu0
        %v518 = vadd.f32 %v425, %v517
        %v519 = vpop.f32.mrb[0].mxu0
        %v520 = vpop.f32.mrb[0].mxu0
        %v521 = vadd.f32 %v425, %v520
        %v522 = vpop.f32.mrb[0].mxu0
        %523 = vdwg.mxu0
        %v524 = vmax.f32 %v510, 0.0
        %v525 = vmax.f32 %v513, 0.0
        %v526 = vmax.f32 %v518, 0.0
        %v527 = vmax.f32 %v521, 0.0
        %v528 = vpack.c.bf16 %v525, %v524
        %v529 = vpack.c.bf16 %v527, %v526
        %530 = vmatprep.subr.bf16.mxu0 0
        %531 = vmatpush1.bf16.msra.mxu0 %v459
        %532 = vmatprep.subr.bf16.mxu0 0
        %533 = vmatpush1.bf16.msra.mxu0 %v460
        %534 = vmatprep.subr.bf16.mxu0 0
        %535 = vmatpush1.bf16.msra.mxu0 %v461
        %536 = vmatprep.subr.bf16.mxu0 0
        %537 = vmatpush1.bf16.msra.mxu0 %v462
        %538 = vmatprep.subr.bf16.mxu0 0
        %539 = vmatpush1.bf16.msra.mxu0 %v463
        %540 = vmatprep.subr.bf16.mxu0 0
        %541 = vmatpush1.bf16.msra.mxu0 %v464
        %542 = vmatprep.subr.bf16.mxu0 0
        %543 = vmatpush1.bf16.msra.mxu0 %v465
        %544 = vmatprep.subr.bf16.mxu0 0
        %545 = vmatpush1.bf16.msra.mxu0 %v466
        %546 = vmatprep.subr.bf16.mxu0 0
        %547 = vmatpush1.bf16.msra.mxu0 0
        %548 = vmatprep.subr.bf16.mxu0 0
        %549 = vmatpush1.bf16.msra.mxu0 0
        %550 = vmatprep.subr.bf16.mxu0 0
        %551 = vmatpush1.bf16.msra.mxu0 0
        %552 = vmatprep.subr.bf16.mxu0 0
        %553 = vmatpush1.bf16.msra.mxu0 0
        %554 = vmatprep.subr.bf16.mxu0 0
        %555 = vmatpush1.bf16.msra.mxu0 0
        %556 = vmatprep.subr.bf16.mxu0 0
        %557 = vmatpush1.bf16.msra.mxu0 0
        %558 = vmatprep.subr.bf16.mxu0 0
        %559 = vmatpush1.bf16.msra.mxu0 0
        %560 = vmatprep.subr.bf16.mxu0 0
        %561 = vmatpush1.bf16.msra.mxu0 0
        %562 = vmatprep.mubr.bf16.mxu0 0
        %563 = vmatmul.mubr.bf16.gmra.mrb[0].mxu0 %v528
        %v564 = vpop.f32.mrb[0].mxu0
        %v565 = vadd.f32 %v425, %v564
        %v566 = vpop.f32.mrb[0].mxu0
        %v567 = vpop.f32.mrb[0].mxu0
        %v568 = vadd.f32 %v425, %v567
        %v569 = vpop.f32.mrb[0].mxu0
        %570 = vmatprep.mubr.bf16.mxu0 0
        %571 = vmatmul.mubr.bf16.gmra.mrb[0].mxu0 %v529
        %v572 = vpop.f32.mrb[0].mxu0
        %v573 = vadd.f32 %v425, %v572
        %v574 = vpop.f32.mrb[0].mxu0
        %v575 = vpop.f32.mrb[0].mxu0
        %v576 = vadd.f32 %v425, %v575
        %v577 = vpop.f32.mrb[0].mxu0
        %578 = vdwg.mxu0
        %v579 = vmax.f32 %v565, 0.0
        %v580 = vmax.f32 %v568, 0.0
        %v581 = vmax.f32 %v573, 0.0
        %v582 = vmax.f32 %v576, 0.0
        %v583 = vpack.c.bf16 %v580, %v579
        %v584 = vpack.c.bf16 %v582, %v581
        %v585 = vld [vmem:[%s5] sm:$0xf]
        %v586 = vld [vmem:[%s5 + $0x4] sm:$0xf]
        %v587 = vld [vmem:[%s5 + $0x8] sm:$0xf]
        %v588 = vld [vmem:[%s5 + $0xc] sm:$0xf]
        %v589 = vld [vmem:[%s5 + $0x10] sm:$0xf]
        %v590 = vld [vmem:[%s5 + $0x14] sm:$0xf]
        %v591 = vld [vmem:[%s5 + $0x18] sm:$0xf]
        %v592 = vld [vmem:[%s5 + $0x1c] sm:$0xf]
        %v593 = vld [vmem:[%s5 + $0x20] sm:$0xf]
        %v594 = vld [vmem:[%s5 + $0x24] sm:$0xf]
        %v595 = vld [vmem:[%s5 + $0x28] sm:$0xf]
        %v596 = vld [vmem:[%s5 + $0x2c] sm:$0xf]
        %v597 = vld [vmem:[%s5 + $0x30] sm:$0xf]
        %v598 = vld [vmem:[%s5 + $0x34] sm:$0xf]
        %v599 = vld [vmem:[%s5 + $0x38] sm:$0xf]
        %v600 = vld [vmem:[%s5 + $0x3c] sm:$0xf]
        %v601 = vld [vmem:[%s6] sm:$0x1]
        %v603 = vlaneseq
        %v604 = vshrl.u32 %v603, 7
        %v605 = vsub.s32 0, %v604
        %v606 = vrot.slane %v601, %v605
        %v624 = vunpack.c.l.b16 %v585
        %v625 = vunpack.c.l.b16 %v586
        %v626 = vunpack.c.l.b16 %v587
        %v627 = vunpack.c.l.b16 %v588
        %v628 = vunpack.c.l.b16 %v589
        %v629 = vunpack.c.l.b16 %v590
        %v630 = vunpack.c.l.b16 %v591
        %v631 = vunpack.c.l.b16 %v592
        %v632 = vunpack.c.l.b16 %v593
        %v633 = vunpack.c.l.b16 %v594
        %v634 = vunpack.c.l.b16 %v595
        %v635 = vunpack.c.l.b16 %v596
        %v636 = vunpack.c.l.b16 %v597
        %v637 = vunpack.c.l.b16 %v598
        %v638 = vunpack.c.l.b16 %v599
        %v639 = vunpack.c.l.b16 %v600
        %v640 = vpack.c.b16 %v625, %v624
        %v641 = vpack.c.b16 %v627, %v626
        %v642 = vpack.c.b16 %v629, %v628
        %v643 = vpack.c.b16 %v631, %v630
        %v644 = vpack.c.b16 %v633, %v632
        %v645 = vpack.c.b16 %v635, %v634
        %v646 = vpack.c.b16 %v637, %v636
        %v647 = vpack.c.b16 %v639, %v638
        %656 = vmatprep.subr.bf16.mxu0 0
        %657 = vmatpush1.bf16.msra.mxu0 %v640
        %658 = vmatprep.subr.bf16.mxu0 0
        %659 = vmatpush1.bf16.msra.mxu0 %v641
        %660 = vmatprep.subr.bf16.mxu0 0
        %661 = vmatpush1.bf16.msra.mxu0 %v642
        %662 = vmatprep.subr.bf16.mxu0 0
        %663 = vmatpush1.bf16.msra.mxu0 %v643
        %664 = vmatprep.subr.bf16.mxu0 0
        %665 = vmatpush1.bf16.msra.mxu0 %v644
        %666 = vmatprep.subr.bf16.mxu0 0
        %667 = vmatpush1.bf16.msra.mxu0 %v645
        %668 = vmatprep.subr.bf16.mxu0 0
        %669 = vmatpush1.bf16.msra.mxu0 %v646
        %670 = vmatprep.subr.bf16.mxu0 0
        %671 = vmatpush1.bf16.msra.mxu0 %v647
        %672 = vmatprep.subr.bf16.mxu0 0
        %673 = vmatpush1.bf16.msra.mxu0 0
        %674 = vmatprep.subr.bf16.mxu0 0
        %675 = vmatpush1.bf16.msra.mxu0 0
        %676 = vmatprep.subr.bf16.mxu0 0
        %677 = vmatpush1.bf16.msra.mxu0 0
        %678 = vmatprep.subr.bf16.mxu0 0
        %679 = vmatpush1.bf16.msra.mxu0 0
        %680 = vmatprep.subr.bf16.mxu0 0
        %681 = vmatpush1.bf16.msra.mxu0 0
        %682 = vmatprep.subr.bf16.mxu0 0
        %683 = vmatpush1.bf16.msra.mxu0 0
        %684 = vmatprep.subr.bf16.mxu0 0
        %685 = vmatpush1.bf16.msra.mxu0 0
        %686 = vmatprep.subr.bf16.mxu0 0
        %687 = vmatpush1.bf16.msra.mxu0 0
        %688 = vmatprep.mubr.bf16.mxu0 0
        %689 = vmatmul.mubr.bf16.gmra.mrb[0].mxu0 %v583
        %v690 = vpop.f32.mrb[0].mxu0
        %v691 = vadd.f32 %v606, %v690
        %v692 = vpop.f32.mrb[0].mxu0
        %v693 = vpop.f32.mrb[0].mxu0
        %v694 = vadd.f32 %v606, %v693
        %v695 = vpop.f32.mrb[0].mxu0
        %696 = vmatprep.mubr.bf16.mxu0 0
        %697 = vmatmul.mubr.bf16.gmra.mrb[0].mxu0 %v584
        %v698 = vpop.f32.mrb[0].mxu0
        %v699 = vadd.f32 %v606, %v698
        %v700 = vpop.f32.mrb[0].mxu0
        %v701 = vpop.f32.mrb[0].mxu0
        %v702 = vadd.f32 %v606, %v701
        %v703 = vpop.f32.mrb[0].mxu0
        %704 = vdwg.mxu0
        %vm705 = vcmask 818176
        %706 = vst.msk [vmem:[%s284] sm:$0xff] %vm705, %v691
        %707 = vst.msk [vmem:[%s284 + $0x8] sm:$0xff] %vm705, %v694
        %708 = vst.msk [vmem:[%s284 + $0x10] sm:$0xff] %vm705, %v699
        %709 = vst.msk [vmem:[%s284 + $0x18] sm:$0xff] %vm705, %v702
        %s710 = sand.u32 %s181, 1
        %s711 = scalar_lea.sflag [#allocation3], %s710
        %s712 = sand.u32 %s181, 1
        %s713 = smul.addr %s712, 32
        %s714 = scalar_lea.vmem [#allocation2], %s713
        // Predicated region
        $region49: #{tpu_custom_call.1} parent=47 // pred_check
          %p715 = pneg %p191
        $region50: #{tpu_custom_call.1} parent=47 // pred_check_branch
          %717 = sbr.rel (%p715) target = $region52
        $region51: #{tpu_custom_call.1} parent=47 // pred_region
          %s718 = smul.u32 4, %s21
          %s719 = ssub.s32 7, %s718
          %p720 = scmp.lt.s32.totalorder %s719, 4
          %s721 = scalar_select %p720, %s719, 4
          %s722 = smul.u32 128, %s721
          %s724 = ssub.s32 512, %s722
          %725 = vsyncadd %s711, %s724
          %p726 = scmp.ne.s32.totalorder 0, %s722
          %s727 = smul.addr %s718, 128
          %s728 = scalar_lea.hbm %s7, %s727
          %s729 = smul.u32 8, %s721
          %s730 = sshll.u32 %s714, 4
          %s731 = int_to_ptr.vmem [resolvable:$true] %s730
          %s732 = sshll.u32 %s729, 4
          %736 = dma.vmem_to_hbm [thread:$0]  (%p726), %s731, %s732, %s728, %s711, 128, 128, 8
        $region52: #{tpu_custom_call.1} parent=47 // pred_fallthru
          _
      $region48: #{tpu_custom_call.1} parent=5 // pred_fallthru
        _
      %p737 = scmp.le.s32.totalorder 2, %s16
      // Predicated region
      $region53: #{tpu_custom_call.1} parent=5 // pred_check
        %p738 = pneg %p737
      $region54: #{tpu_custom_call.1} parent=5 // pred_check_branch
        %740 = sbr.rel (%p738) target = $region56
      $region55: #{tpu_custom_call.1} parent=5 // pred_region
        %s741 = ssub.s32 %s16, 2
        // Predicated region
        $region57: #{tpu_custom_call.1} parent=55 // pred_check
          %p742 = pneg %p197
        $region58: #{tpu_custom_call.1} parent=55 // pred_check_branch
          %744 = sbr.rel (%p742) target = $region60
        $region59: #{tpu_custom_call.1} parent=55 // pred_region
          %s745 = sand.u32 %s182, 1
          %s746 = scalar_lea.sflag [#allocation3], %s745
          %s747 = sand.u32 %s182, 1
          %s748 = smul.addr %s747, 32
          %s749 = scalar_lea.vmem [#allocation2], %s748
          %750 = dma.done %s746, 512
        $region60: #{tpu_custom_call.1} parent=55 // pred_fallthru
          _
      $region56: #{tpu_custom_call.1} parent=5 // pred_fallthru
        _
    $region6: #{tpu_custom_call.1} parent=1 // loop_footer
      %s20 = sadd.s32 1, %s16
    $region7: #{tpu_custom_call.1} parent=1 // loop_footer_branch
      %15 = sbr.rel target = $region3
    $region8: #{tpu_custom_call.1} parent=1 // loop_exit
      _
    %751 = vsyncpa [#allocation3], 1
    %s752 = scalar_lea.sflag [#allocation3], 1
    %753 = vsyncpa %s752, 1

</llo_original>
